<compile_context>
chip_gen: v6e
topology: v6e:2x2x1
jax: 0.10.0
libtpu: 0.0.40
codegen_flags: <defaults>
</compile_context>

<pallas_src>
import jax
import jax.numpy as jnp
import numpy as np
from jax.experimental import pallas as pl
from jax.experimental.pallas import tpu as pltpu


def _round_up(a, m):
    return (a + m - 1) // m * m


def _choose_tiles(n, tq_max, tkv_max):
    """Returns (N_pad, tq, tkv); tq and tkv both divide N_pad, 8-aligned."""
    n8 = _round_up(n, 8)
    if n8 <= tkv_max:
        # Whole kv row fits in one tile -> single-pass softmax fast path.
        n_pad = n8
        tq = min(tq_max, n_pad)
        while n_pad % tq:
            tq -= 8
        return n_pad, tq, n_pad
    tkv = tkv_max
    n_pad = _round_up(n, tkv)
    tq = tkv
    m = 2
    while m * tkv <= tq_max:
        if n_pad % (m * tkv) == 0:
            tq = m * tkv
        m += 1
    return n_pad, tq, tkv


# --------------------------------------------------------------------------
# Kernel 1: 1x1-conv projections (q = xWq + bq, k = xWk, v = xWv + bv),
# computed once per (batch, spatial tile).  bk is dropped on purpose: the
# q.bk term is constant along the softmax axis and cancels exactly.
# --------------------------------------------------------------------------
def _proj_kernel(x_ref, wq_ref, wk_ref, wv_ref, bq_ref, bv_ref,
                 q_ref, k_ref, v_ref):
    x = x_ref[0].astype(wq_ref.dtype)                       # (tp, C_pad)
    q = jnp.dot(x, wq_ref[...], preferred_element_type=jnp.float32) + bq_ref[...]
    k = jnp.dot(x, wk_ref[...], preferred_element_type=jnp.float32)
    v = jnp.dot(x, wv_ref[...], preferred_element_type=jnp.float32) + bv_ref[...]
    q_ref[0] = q.astype(q_ref.dtype)
    k_ref[0] = k.astype(k_ref.dtype)
    v_ref[0] = v.astype(v_ref.dtype)


# --------------------------------------------------------------------------
# Kernel 2a: attention, single kv tile (whole row of keys fits in one block).
# --------------------------------------------------------------------------
def _single_tile_kernel(q_ref, k_ref, v_ref, xres_ref, mask_ref, gamma_ref,
                        o_ref):
    s = jax.lax.dot_general(q_ref[0], k_ref[0],
                            dimension_numbers=(((1,), (1,)), ((), ())),
                            preferred_element_type=jnp.float32)   # (tq, N_pad)
    s = s + mask_ref[...]                                         # mask padded cols
    m = jnp.max(s, axis=-1, keepdims=True)
    p = jnp.exp(s - m)
    denom = jnp.sum(p, axis=-1, keepdims=True)
    attn = jnp.dot(p.astype(v_ref.dtype), v_ref[0],
                   preferred_element_type=jnp.float32)
    attn = attn * pl.reciprocal(denom, approx=False)
    o_ref[0] = (gamma_ref[0] * attn
                + xres_ref[0].astype(jnp.float32)).astype(o_ref.dtype)


# --------------------------------------------------------------------------
# Kernel 2b: flash attention (online softmax) for large spatial maps.
# Grid = (B, n_q, n_kv), kv axis last + "arbitrary"; stats in VMEM scratch.
# --------------------------------------------------------------------------
def _flash_kernel(q_ref, k_ref, v_ref, xres_ref, mask_ref, gamma_ref, o_ref,
                  m_sc, l_sc, acc_sc):
    ki = pl.program_id(2)

    @pl.when(ki == 0)
    def _init():
        m_sc[...] = jnp.full(m_sc.shape, -jnp.inf, m_sc.dtype)
        l_sc[...] = jnp.zeros(l_sc.shape, l_sc.dtype)
        acc_sc[...] = jnp.zeros(acc_sc.shape, acc_sc.dtype)

    # Energy tile: contract last dims directly (no explicit k.T); stays f32
    # so the -1e30 mask constant is safe.
    s = jax.lax.dot_general(q_ref[0], k_ref[0],
                            dimension_numbers=(((1,), (1,)), ((), ())),
                            preferred_element_type=jnp.float32)   # (tq, tkv)
    s = s + mask_ref[...]

    m_prev = m_sc[...]
    m_new = jnp.maximum(m_prev, jnp.max(s, axis=-1, keepdims=True))
    alpha = jnp.exp(m_prev - m_new)
    p = jnp.exp(s - m_new)
    l_sc[...] = alpha * l_sc[...] + jnp.sum(p, axis=-1, keepdims=True)
    acc_sc[...] = alpha * acc_sc[...] + jnp.dot(
        p.astype(v_ref.dtype), v_ref[0], preferred_element_type=jnp.float32)
    m_sc[...] = m_new

    @pl.when(ki == pl.num_programs(2) - 1)
    def _finalize():
        attn = acc_sc[...] * pl.reciprocal(l_sc[...], approx=False)
        o_ref[0] = (gamma_ref[0] * attn
                    + xres_ref[0].astype(jnp.float32)).astype(o_ref.dtype)


# --------------------------------------------------------------------------
# Wrapper.
# --------------------------------------------------------------------------
def self_attn_pallas(x_nchw, wq, bq, wk, bk, wv, bv, gamma, *,
                     tq_max=512, tkv_max=None, compute_dtype=None):
    """x_nchw: (B, C, W, H). wq/wk: (C//8, C), wv: (C, C) (torch 1x1-conv layout).

    bk is accepted for API compatibility but unused: softmax cancels it exactly.
    """
    B, C, W, H = x_nchw.shape
    N = W * H
    Cq = wq.shape[0]
    in_dt = x_nchw.dtype
    f32 = jnp.float32

    # ---- per-generation choices -------------------------------------------
    kind = ""
    try:
        kind = jax.devices()[0].device_kind.lower()
    except Exception:
        pass
    is_v5 = "v5" in kind
    is_v7 = "v7" in kind

    if tkv_max is None:
        tkv_max = 128 if is_v5 else 256        # v5e: smaller kv tile, less vreg spill
    if compute_dtype is None:
        compute_dtype = jnp.bfloat16 if in_dt == jnp.float32 else in_dt
    vmem_limit = (48 if is_v7 else 64) * 1024 * 1024

    # ---- padding / tiles ----------------------------------------------------
    C_pad = _round_up(C, 128)                  # lane-dense channels
    Cq_pad = _round_up(max(Cq, 1), 128)        # full-depth q.k^T contraction
    N_pad, tq, tkv = _choose_tiles(N, tq_max, tkv_max)
    tp = tq                                    # projection tile (pre megacore split)

    # v7x megacore: keep >= 2 parallel (batch x query-tile) blocks so both
    # TensorCores get work even on single-image, single-tile maps.
    if is_v7 and B * (N_pad // tq) < 2:
        cand = tq - 8
        while cand >= 8:
            if N_pad % cand == 0:
                tq = cand
                break
            cand -= 8

    # ---- data prep (NCHW -> (B, N, C), zero-pad spatial + channels) --------
    x_bnc = jnp.transpose(x_nchw.reshape(B, C, N), (0, 2, 1))
    x_pad = jnp.pad(x_bnc, ((0, 0), (0, N_pad - N), (0, C_pad - C)))

    def pad_w(w, n_out_pad):
        # (out, in) torch layout -> (C_pad, n_out_pad); padded entries exact zero.
        wt = jnp.zeros((C_pad, n_out_pad), f32).at[:C, :w.shape[0]].set(
            w.astype(f32).T)
        return wt.astype(compute_dtype)

    def pad_b(b, n_out_pad):
        return jnp.zeros((1, n_out_pad), f32).at[0, :b.shape[0]].set(b.astype(f32))

    wq_p, wk_p, wv_p = pad_w(wq, Cq_pad), pad_w(wk, Cq_pad), pad_w(wv, C_pad)
    bq_p, bv_p = pad_b(bq, Cq_pad), pad_b(bv, C_pad)
    del bk  # dropped: constant along softmax axis

    gamma1 = jnp.asarray(gamma, f32).reshape(1)
    # Additive mask for padded kv columns (0 valid / -1e30 padded); energies are f32.
    mask = jnp.where(jnp.arange(N_pad) < N, 0.0, -1e30).astype(f32).reshape(1, N_pad)

    # ---- kernel 1: hoisted q/k/v projections --------------------------------
    q_all, k_all, v_all = pl.pallas_call(
        _proj_kernel,
        out_shape=(jax.ShapeDtypeStruct((B, N_pad, Cq_pad), compute_dtype),
                   jax.ShapeDtypeStruct((B, N_pad, Cq_pad), compute_dtype),
                   jax.ShapeDtypeStruct((B, N_pad, C_pad), compute_dtype)),
        grid=(B, N_pad // tp),
        in_specs=[
            pl.BlockSpec((1, tp, C_pad), lambda b, i: (b, i, 0)),   # x tile
            pl.BlockSpec((C_pad, Cq_pad), lambda b, i: (0, 0)),     # Wq^T
            pl.BlockSpec((C_pad, Cq_pad), lambda b, i: (0, 0)),     # Wk^T
            pl.BlockSpec((C_pad, C_pad), lambda b, i: (0, 0)),      # Wv^T
            pl.BlockSpec((1, Cq_pad), lambda b, i: (0, 0)),         # bq
            pl.BlockSpec((1, C_pad), lambda b, i: (0, 0)),          # bv
        ],
        out_specs=(pl.BlockSpec((1, tp, Cq_pad), lambda b, i: (b, i, 0)),
                   pl.BlockSpec((1, tp, Cq_pad), lambda b, i: (b, i, 0)),
                   pl.BlockSpec((1, tp, C_pad), lambda b, i: (b, i, 0))),
        compiler_params=pltpu.CompilerParams(
            dimension_semantics=("parallel", "parallel"),
            vmem_limit_bytes=vmem_limit),
    )(x_pad, wq_p, wk_p, wv_p, bq_p, bv_p)

    # ---- kernel 2: attention + residual -------------------------------------
    n_q = N_pad // tq
    n_kv = N_pad // tkv
    inputs = (q_all, k_all, v_all, x_pad, mask, gamma1)

    if n_kv == 1:
        out_pad = pl.pallas_call(
            _single_tile_kernel,
            out_shape=jax.ShapeDtypeStruct((B, N_pad, C_pad), in_dt),
            grid=(B, n_q),
            in_specs=[
                pl.BlockSpec((1, tq, Cq_pad), lambda b, qi: (b, qi, 0)),     # q
                pl.BlockSpec((1, N_pad, Cq_pad), lambda b, qi: (b, 0, 0)),   # k (all)
                pl.BlockSpec((1, N_pad, C_pad), lambda b, qi: (b, 0, 0)),    # v (all)
                pl.BlockSpec((1, tq, C_pad), lambda b, qi: (b, qi, 0)),      # x resid
                pl.BlockSpec((1, N_pad), lambda b, qi: (0, 0)),              # mask
                pl.BlockSpec(memory_space=pltpu.MemorySpace.SMEM),           # gamma
            ],
            out_specs=pl.BlockSpec((1, tq, C_pad), lambda b, qi: (b, qi, 0)),
            compiler_params=pltpu.CompilerParams(
                dimension_semantics=("parallel", "parallel"),
                vmem_limit_bytes=vmem_limit),
        )(*inputs)
    else:
        out_pad = pl.pallas_call(
            _flash_kernel,
            out_shape=jax.ShapeDtypeStruct((B, N_pad, C_pad), in_dt),
            grid=(B, n_q, n_kv),
            in_specs=[
                pl.BlockSpec((1, tq, Cq_pad), lambda b, qi, ki: (b, qi, 0)),  # q
                pl.BlockSpec((1, tkv, Cq_pad), lambda b, qi, ki: (b, ki, 0)), # k
                pl.BlockSpec((1, tkv, C_pad), lambda b, qi, ki: (b, ki, 0)),  # v
                pl.BlockSpec((1, tq, C_pad), lambda b, qi, ki: (b, qi, 0)),   # x resid
                pl.BlockSpec((1, tkv), lambda b, qi, ki: (0, ki)),            # mask
                pl.BlockSpec(memory_space=pltpu.MemorySpace.SMEM),            # gamma
            ],
            out_specs=pl.BlockSpec((1, tq, C_pad), lambda b, qi, ki: (b, qi, 0)),
            scratch_shapes=[
                pltpu.VMEM((tq, 1), jnp.float32),       # running max m
                pltpu.VMEM((tq, 1), jnp.float32),       # running denom l
                pltpu.VMEM((tq, C_pad), jnp.float32),   # output accumulator
            ],
            compiler_params=pltpu.CompilerParams(
                dimension_semantics=("parallel", "parallel", "arbitrary"),
                vmem_limit_bytes=vmem_limit),
        )(*inputs)

    out_bnc = out_pad[:, :N, :C]
    return jnp.transpose(out_bnc, (0, 2, 1)).reshape(B, C, W, H)


def self_attn_reference(x_nchw, wq, bq, wk, bk, wv, bv, gamma):
    """Pure-JAX reference mirroring the PyTorch forward exactly (NCHW, f32)."""
    B, C, W, H = x_nchw.shape
    N = W * H
    xf = x_nchw.astype(jnp.float32).reshape(B, C, N)
    proj_q = jnp.einsum('oc,bcn->bon', wq, xf) + bq[None, :, None]   # (B, Cq, N)
    proj_k = jnp.einsum('oc,bcn->bon', wk, xf) + bk[None, :, None]   # (B, Cq, N)
    proj_v = jnp.einsum('oc,bcn->bon', wv, xf) + bv[None, :, None]   # (B, C, N)
    energy = jnp.einsum('bcn,bcm->bnm', proj_q, proj_k)              # (B, N, N)
    attn = jax.nn.softmax(energy, axis=-1)
    out = jnp.einsum('bcn,bmn->bcm', proj_v, attn)                   # (B, C, N)
    return gamma * out.reshape(B, C, W, H) + x_nchw.astype(jnp.float32)


if __name__ == "__main__":
    def make_params(key, B, C, W, H):
        Cq = max(C // 8, 1)
        ks = jax.random.split(key, 7)
        x = jax.random.normal(ks[0], (B, C, W, H), jnp.float32)
        wq = jax.random.normal(ks[1], (Cq, C), jnp.float32) * 0.1
        wk = jax.random.normal(ks[2], (Cq, C), jnp.float32) * 0.1
        wv = jax.random.normal(ks[3], (C, C), jnp.float32) * 0.1
        bq = jax.random.normal(ks[4], (Cq,), jnp.float32) * 0.1
        bk = jax.random.normal(ks[5], (Cq,), jnp.float32) * 0.1
        bv = jax.random.normal(ks[6], (C,), jnp.float32) * 0.1
        return x, wq, bq, wk, bk, wv, bv

    key = jax.random.PRNGKey(0)
    k1, k2, k3 = jax.random.split(key, 3)

    # Case 1: main shape, full f32 compute path -> tight tolerance.
    x, wq, bq, wk, bk, wv, bv = make_params(k1, B=2, C=32, W=8, H=8)
    ref = self_attn_reference(x, wq, bq, wk, bk, wv, bv, jnp.float32(0.5))
    out = jax.block_until_ready(self_attn_pallas(
        x, wq, bq, wk, bk, wv, bv, jnp.float32(0.5), compute_dtype=jnp.float32))
    assert out.shape == (2, 32, 8, 8)
    np.testing.assert_allclose(np.asarray(out), np.asarray(ref),
                               rtol=1e-4, atol=1e-4)

    # Case 2: default (bf16 MXU operands), gamma=0 -> exact residual pass-through.
    out0 = jax.block_until_ready(self_attn_pallas(
        x, wq, bq, wk, bk, wv, bv, jnp.float32(0.0)))
    ref0 = self_attn_reference(x, wq, bq, wk, bk, wv, bv, jnp.float32(0.0))
    np.testing.assert_allclose(np.asarray(out0), np.asarray(ref0),
                               rtol=1e-6, atol=1e-6)

    # Case 3: default (bf16 MXU operands), gamma=0.5 -> loose tolerance.
    out1 = jax.block_until_ready(self_attn_pallas(
        x, wq, bq, wk, bk, wv, bv, jnp.float32(0.5)))
    np.testing.assert_allclose(np.asarray(out1), np.asarray(ref),
                               rtol=5e-2, atol=5e-2)

    # Case 4: bf16 inputs / weights end-to-end.
    out_bf = jax.block_until_ready(self_attn_pallas(
        x.astype(jnp.bfloat16), wq.astype(jnp.bfloat16), bq,
        wk.astype(jnp.bfloat16), bk, wv.astype(jnp.bfloat16), bv,
        jnp.float32(0.5)))
    np.testing.assert_allclose(np.asarray(out_bf, np.float32), np.asarray(ref),
                               rtol=5e-2, atol=5e-2)

    # Case 5: non-8-aligned spatial size (7x7) -> exercises the kv padding mask.
    x3, wq3, bq3, wk3, bk3, wv3, bv3 = make_params(k2, B=1, C=16, W=7, H=7)
    out3 = jax.block_until_ready(self_attn_pallas(
        x3, wq3, bq3, wk3, bk3, wv3, bv3, jnp.float32(1.0),
        compute_dtype=jnp.float32))
    ref3 = self_attn_reference(x3, wq3, bq3, wk3, bk3, wv3, bv3, jnp.float32(1.0))
    np.testing.assert_allclose(np.asarray(out3), np.asarray(ref3),
                               rtol=1e-4, atol=1e-4)

    # Case 6: larger map (24x24, N=576) -> exercises the multi-kv flash path.
    x4, wq4, bq4, wk4, bk4, wv4, bv4 = make_params(k3, B=1, C=16, W=24, H=24)
    out4 = jax.block_until_ready(self_attn_pallas(
        x4, wq4, bq4, wk4, bk4, wv4, bv4, jnp.float32(0.7),
        compute_dtype=jnp.float32))
    ref4 = self_attn_reference(x4, wq4, bq4, wk4, bk4, wv4, bv4, jnp.float32(0.7))
    np.testing.assert_allclose(np.asarray(out4), np.asarray(ref4),
                               rtol=1e-4, atol=1e-4)

    print("KERNEL_OK")
</pallas_src>

<mosaic_0001>
module attributes {stable_mosaic.version = 11 : i64} {
  func.func @_proj_kernel(%arg0: i32, %arg1: i32, %arg2: memref<1x64x128xf32, #tpu.memory_space<vmem>>, %arg3: memref<128x128xf32, #tpu.memory_space<vmem>>, %arg4: memref<128x128xf32, #tpu.memory_space<vmem>>, %arg5: memref<128x128xf32, #tpu.memory_space<vmem>>, %arg6: memref<1x128xf32, #tpu.memory_space<vmem>>, %arg7: memref<1x128xf32, #tpu.memory_space<vmem>>, %arg8: memref<1x64x128xf32, #tpu.memory_space<vmem>>, %arg9: memref<1x64x128xf32, #tpu.memory_space<vmem>>, %arg10: memref<1x64x128xf32, #tpu.memory_space<vmem>>) attributes {dimension_semantics = [#tpu.dimension_semantics<parallel>, #tpu.dimension_semantics<parallel>], iteration_bounds = array<i64: 2, 1>, scalar_prefetch = 0 : i64, scratch_operands = 0 : i64, tpu.core_type = #tpu.core_type<tc>, window_params = [{transform_indices = @transform_0, window_bounds = array<i64: 1, 64, 128>}, {pipeline_mode = #tpu.pipeline_mode<synchronous>, transform_indices = @transform_1, window_bounds = array<i64: 128, 128>}, {pipeline_mode = #tpu.pipeline_mode<synchronous>, transform_indices = @transform_2, window_bounds = array<i64: 128, 128>}, {pipeline_mode = #tpu.pipeline_mode<synchronous>, transform_indices = @transform_3, window_bounds = array<i64: 128, 128>}, {pipeline_mode = #tpu.pipeline_mode<synchronous>, transform_indices = @transform_4, window_bounds = array<i64: 1, 128>}, {pipeline_mode = #tpu.pipeline_mode<synchronous>, transform_indices = @transform_5, window_bounds = array<i64: 1, 128>}, {transform_indices = @transform_6, window_bounds = array<i64: 1, 64, 128>}, {transform_indices = @transform_7, window_bounds = array<i64: 1, 64, 128>}, {transform_indices = @transform_8, window_bounds = array<i64: 1, 64, 128>}]} {
    %c0 = arith.constant 0 : index
    %c0_0 = arith.constant 0 : index
    %c0_1 = arith.constant 0 : index
    %0 = vector.load %arg2[%c0, %c0_0, %c0_1] : memref<1x64x128xf32, #tpu.memory_space<vmem>>, vector<1x64x128xf32>
    %1 = vector.shape_cast %0 : vector<1x64x128xf32> to vector<64x128xf32>
    %c0_2 = arith.constant 0 : index
    %c0_3 = arith.constant 0 : index
    %2 = vector.load %arg3[%c0_2, %c0_3] : memref<128x128xf32, #tpu.memory_space<vmem>>, vector<128x128xf32>
    %cst = arith.constant dense<0.000000e+00> : vector<64x128xf32>
    %3 = tpu.matmul %1, %2, %cst {dimension_numbers = #tpu.dot_dimension_numbers<[1], [0], [0], [1], [0, 0, 1, 1], [], []>} : vector<64x128xf32>, vector<128x128xf32>, vector<64x128xf32> -> vector<64x128xf32>
    %c0_4 = arith.constant 0 : index
    %c0_5 = arith.constant 0 : index
    %4 = vector.load %arg6[%c0_4, %c0_5] : memref<1x128xf32, #tpu.memory_space<vmem>>, vector<1x128xf32>
    %5 = vector.broadcast %4 : vector<1x128xf32> to vector<64x128xf32>
    %6 = arith.addf %3, %5 : vector<64x128xf32>
    %c0_6 = arith.constant 0 : index
    %c0_7 = arith.constant 0 : index
    %7 = vector.load %arg4[%c0_6, %c0_7] : memref<128x128xf32, #tpu.memory_space<vmem>>, vector<128x128xf32>
    %cst_8 = arith.constant dense<0.000000e+00> : vector<64x128xf32>
    %8 = tpu.matmul %1, %7, %cst_8 {dimension_numbers = #tpu.dot_dimension_numbers<[1], [0], [0], [1], [0, 0, 1, 1], [], []>} : vector<64x128xf32>, vector<128x128xf32>, vector<64x128xf32> -> vector<64x128xf32>
    %c0_9 = arith.constant 0 : index
    %c0_10 = arith.constant 0 : index
    %9 = vector.load %arg5[%c0_9, %c0_10] : memref<128x128xf32, #tpu.memory_space<vmem>>, vector<128x128xf32>
    %cst_11 = arith.constant dense<0.000000e+00> : vector<64x128xf32>
    %10 = tpu.matmul %1, %9, %cst_11 {dimension_numbers = #tpu.dot_dimension_numbers<[1], [0], [0], [1], [0, 0, 1, 1], [], []>} : vector<64x128xf32>, vector<128x128xf32>, vector<64x128xf32> -> vector<64x128xf32>
    %c0_12 = arith.constant 0 : index
    %c0_13 = arith.constant 0 : index
    %11 = vector.load %arg7[%c0_12, %c0_13] : memref<1x128xf32, #tpu.memory_space<vmem>>, vector<1x128xf32>
    %12 = vector.broadcast %11 : vector<1x128xf32> to vector<64x128xf32>
    %13 = arith.addf %10, %12 : vector<64x128xf32>
    %c0_14 = arith.constant 0 : index
    %c0_15 = arith.constant 0 : index
    %c0_16 = arith.constant 0 : index
    %14 = vector.load %arg8[%c0_14, %c0_15, %c0_16] : memref<1x64x128xf32, #tpu.memory_space<vmem>>, vector<1x64x128xf32>
    %15 = vector.shape_cast %14 : vector<1x64x128xf32> to vector<64x128xf32>
    %16 = vector.shape_cast %6 : vector<64x128xf32> to vector<1x64x128xf32>
    tpu.vector_store %arg8[%c0_14, %c0_15, %c0_16], %16 {strides = array<i32>} : memref<1x64x128xf32, #tpu.memory_space<vmem>>, vector<1x64x128xf32>,
    %c0_17 = arith.constant 0 : index
    %c0_18 = arith.constant 0 : index
    %c0_19 = arith.constant 0 : index
    %17 = vector.load %arg9[%c0_17, %c0_18, %c0_19] : memref<1x64x128xf32, #tpu.memory_space<vmem>>, vector<1x64x128xf32>
    %18 = vector.shape_cast %17 : vector<1x64x128xf32> to vector<64x128xf32>
    %19 = vector.shape_cast %8 : vector<64x128xf32> to vector<1x64x128xf32>
    tpu.vector_store %arg9[%c0_17, %c0_18, %c0_19], %19 {strides = array<i32>} : memref<1x64x128xf32, #tpu.memory_space<vmem>>, vector<1x64x128xf32>,
    %c0_20 = arith.constant 0 : index
    %c0_21 = arith.constant 0 : index
    %c0_22 = arith.constant 0 : index
    %20 = vector.load %arg10[%c0_20, %c0_21, %c0_22] : memref<1x64x128xf32, #tpu.memory_space<vmem>>, vector<1x64x128xf32>
    %21 = vector.shape_cast %20 : vector<1x64x128xf32> to vector<64x128xf32>
    %22 = vector.shape_cast %13 : vector<64x128xf32> to vector<1x64x128xf32>
    tpu.vector_store %arg10[%c0_20, %c0_21, %c0_22], %22 {strides = array<i32>} : memref<1x64x128xf32, #tpu.memory_space<vmem>>, vector<1x64x128xf32>,
    return
  }
  func.func @transform_0(%arg0: i32, %arg1: i32) -> (i32, i32, i32) {
    %c0_i32 = arith.constant 0 : i32
    %c0_i32_0 = arith.constant 0 : i32
    return %arg0, %arg1, %c0_i32 : i32, i32, i32
  }
  func.func @transform_1(%arg0: i32, %arg1: i32) -> (i32, i32) {
    %c0_i32 = arith.constant 0 : i32
    %c0_i32_0 = arith.constant 0 : i32
    %c0_i32_1 = arith.constant 0 : i32
    return %c0_i32, %c0_i32_0 : i32, i32
  }
  func.func @transform_2(%arg0: i32, %arg1: i32) -> (i32, i32) {
    %c0_i32 = arith.constant 0 : i32
    %c0_i32_0 = arith.constant 0 : i32
    %c0_i32_1 = arith.constant 0 : i32
    return %c0_i32, %c0_i32_0 : i32, i32
  }
  func.func @transform_3(%arg0: i32, %arg1: i32) -> (i32, i32) {
    %c0_i32 = arith.constant 0 : i32
    %c0_i32_0 = arith.constant 0 : i32
    %c0_i32_1 = arith.constant 0 : i32
    return %c0_i32, %c0_i32_0 : i32, i32
  }
  func.func @transform_4(%arg0: i32, %arg1: i32) -> (i32, i32) {
    %c0_i32 = arith.constant 0 : i32
    %c0_i32_0 = arith.constant 0 : i32
    %c0_i32_1 = arith.constant 0 : i32
    return %c0_i32, %c0_i32_0 : i32, i32
  }
  func.func @transform_5(%arg0: i32, %arg1: i32) -> (i32, i32) {
    %c0_i32 = arith.constant 0 : i32
    %c0_i32_0 = arith.constant 0 : i32
    %c0_i32_1 = arith.constant 0 : i32
    return %c0_i32, %c0_i32_0 : i32, i32
  }
  func.func @transform_6(%arg0: i32, %arg1: i32) -> (i32, i32, i32) {
    %c0_i32 = arith.constant 0 : i32
    %c0_i32_0 = arith.constant 0 : i32
    return %arg0, %arg1, %c0_i32 : i32, i32, i32
  }
  func.func @transform_7(%arg0: i32, %arg1: i32) -> (i32, i32, i32) {
    %c0_i32 = arith.constant 0 : i32
    %c0_i32_0 = arith.constant 0 : i32
    return %arg0, %arg1, %c0_i32 : i32, i32, i32
  }
  func.func @transform_8(%arg0: i32, %arg1: i32) -> (i32, i32, i32) {
    %c0_i32 = arith.constant 0 : i32
    %c0_i32_0 = arith.constant 0 : i32
    return %arg0, %arg1, %c0_i32 : i32, i32, i32
  }
}

</mosaic_0001>

<llo_original>
// kernel: tpu_custom_call.1
$region0: #{tpu_custom_call.1}
  #allocation0 [shape = 'u32[]', space=smem, size = 0x4, offset = 0x4, fixed_abs, tag = 'smem constant byte address 0x4 - core index']
  #allocation1 [shape = 'u32[144,128]{1,0:T(1,128)}', space=vmem, size = 0x12000, scoped, tag = 'internal scratch']
  %s0 = inlined_call_operand.hbm [shape: f32[2,64,128], index: 0, kind: input, shape index: {}]
  %s1 = inlined_call_operand.hbm [shape: f32[128,128], index: 1, kind: input, shape index: {}]
  %s2 = inlined_call_operand.hbm [shape: f32[128,128], index: 2, kind: input, shape index: {}]
  %s3 = inlined_call_operand.hbm [shape: f32[128,128], index: 3, kind: input, shape index: {}]
  %s4 = inlined_call_operand.vmem [shape: f32[1,128], index: 4, kind: input, shape index: {}]
  %s5 = inlined_call_operand.vmem [shape: f32[1,128], index: 5, kind: input, shape index: {}]
  %s6 = inlined_call_operand.hbm [shape: f32[2,64,128], index: 6, kind: output, shape index: {0}]
  %s7 = inlined_call_operand.hbm [shape: f32[2,64,128], index: 7, kind: output, shape index: {1}]
  %s8 = inlined_call_operand.hbm [shape: f32[2,64,128], index: 8, kind: output, shape index: {2}]
  %9 = xla_tuple %s6, %s7, %s8
  %s10 = sld [smem:[#allocation0]]
  $region89: #{tpu_custom_call.1} parent=0
    _
  %s12 = ssub.s32 1, %s10
  %s13 = scalar_select 0, %s12, %s10
  $region1: #{tpu_custom_call.1} parent=0
    #allocation2 [shape = 'u8[65536]{0}', space=vmem, size = 0x10000, scoped, tag = 'input window, operand 0']
    #allocation3 [shape = 's32[2]{0}', space=sflag, size = 0x8, scoped, tag = 'scoped memory for tpu_custom_call.1']
    #allocation4 [shape = 's32[2]{0}', space=sflag, size = 0x8, scoped, tag = 'scoped memory for tpu_custom_call.1']
    #allocation5 [shape = 'u8[65536]{0}', space=vmem, size = 0x10000, scoped, tag = 'input window, operand 1, single buffered']
    #allocation6 [shape = 's32[1]{0}', space=sflag, size = 0x4, scoped, tag = 'scoped memory for tpu_custom_call.1']
    #allocation7 [shape = 'u8[65536]{0}', space=vmem, size = 0x10000, scoped, tag = 'input window, operand 2, single buffered']
    #allocation8 [shape = 'u8[65536]{0}', space=vmem, size = 0x10000, scoped, tag = 'input window, operand 3, single buffered']
    #allocation9 [shape = 's32[1]{0}', space=sflag, size = 0x4, scoped, tag = 'scoped memory for tpu_custom_call.1']
    #allocation10 [shape = 'u8[65536]{0}', space=vmem, size = 0x10000, scoped, tag = 'output window, operand 0']
    #allocation11 [shape = 'u8[65536]{0}', space=vmem, size = 0x10000, scoped, tag = 'output window, operand 1']
    #allocation12 [shape = 's32[2]{0}', space=sflag, size = 0x8, scoped, tag = 'scoped memory for tpu_custom_call.1']
    #allocation13 [shape = 'u8[65536]{0}', space=vmem, size = 0x10000, scoped, tag = 'output window, operand 2']
    %14 = vsyncpa [#allocation3], 0
    %s15 = scalar_lea.sflag [#allocation3], 1
    %16 = vsyncpa %s15, 0
    %17 = vsyncpa [#allocation6], 0
    %18 = vsyncpa [#allocation9], 0
    %19 = vsyncpa [#allocation4], 0
    %s20 = scalar_lea.sflag [#allocation4], 1
    %21 = vsyncpa %s20, 0
    %22 = vsyncpa [#allocation12], 0
    %s23 = scalar_lea.sflag [#allocation12], 1
    %24 = vsyncpa %s23, 0
    loop: start=0, step=1, limit=4
    $region2: #{tpu_custom_call.1} parent=1 // loop_pre_header
      _
    $region3: #{tpu_custom_call.1} parent=1 // loop_header
      %s26 = sphi 0, %s30
      %p27 = scmp.ge.s32.totalorder %s26, 4
      %s33 = sphi 0, %s45
      %s34 = sphi 0, %s41
      %s35 = sphi 0, %s33
      %s36 = sphi 0, %s34
      %s37 = sphi 0, %s35
      %s38 = sphi 0, %s36
      %s50 = sphi 0, %s52
      %s53 = sphi 0, %s50
      %s54 = sphi 0, %s53
      %s70 = sphi 0, %s54
      %s74 = sphi 0, %s74
      %s76 = sphi 0, %s74
      %s77 = sphi 0, %s76
      %s91 = sphi 0, %s77
      %s95 = sphi 0, %s95
      %s97 = sphi 0, %s95
      %s98 = sphi 0, %s97
      %s112 = sphi 0, %s98
      %s116 = sphi 0, %s116
      %s118 = sphi 0, %s116
      %s119 = sphi 0, %s118
      %s133 = sphi 0, %s119
      %s137 = sphi 0, %s137
      %s139 = sphi 0, %s137
      %s140 = sphi 0, %s139
      %s154 = sphi 0, %s140
      %s158 = sphi 0, %s158
      %s160 = sphi 0, %s158
      %s161 = sphi 0, %s160
      %s175 = sphi 0, %s161
      %s183 = sphi 0, %s185
      %s186 = sphi 0, %s183
      %s187 = sphi 0, %s186
      %s203 = sphi 0, %s187
      %s211 = sphi 0, %s213
      %s214 = sphi 0, %s211
      %s215 = sphi 0, %s214
      %s231 = sphi 0, %s215
      %s239 = sphi 0, %s241
      %s242 = sphi 0, %s239
      %s243 = sphi 0, %s242
      %s259 = sphi 0, %s243
    $region4: #{tpu_custom_call.1} parent=1 // loop_header_branch
      %29 = sbr.rel (%p27) target = $region8
    $region5: #{tpu_custom_call.1} parent=1 // loop_body
      %s31 = ssub.s32 %s26, 1
      %s32 = ssub.s32 %s26, 2
      %s39 = sadd.s32 1, %s34
      %p40 = scmp.ge.s32.totalorder %s39, 1
      %s41 = scalar_select %p40, 0, %s39
      %s42 = sadd.s32 1, %s33
      %s43 = scalar_select %p40, %s42, %s33
      %p44 = scmp.ge.s32.totalorder %s43, 2
      %s45 = scalar_select %p44, 0, %s43
      %s46 = ssub.s32 %s33, %s45
      %s47 = ssub.s32 %s34, %s41
      %s48 = sor.u32 %s46, %s47
      %p49 = scmp.eq.s32.totalorder %s48, 0
      %s51 = sadd.s32 %s50, 1
      %s52 = scalar_select %p49, %s50, %s51
      %p55 = pneg %p49
      %p56 = scmp.eq.s32.totalorder %s26, 1
      %p57 = por %p55, %p56
      %p58 = scmp.ne.s32.totalorder %s50, %s53
      %p59 = scmp.eq.s32.totalorder %s26, 0
      %p60 = por %p58, %p59
      %p61 = scmp.ne.s32.totalorder %s50, %s53
      %p62 = scmp.eq.s32.totalorder %s31, 1
      %p63 = por %p61, %p62
      %p64 = scmp.ne.s32.totalorder %s53, %s54
      %p65 = scmp.eq.s32.totalorder %s31, 0
      %p66 = por %p64, %p65
      %p67 = scmp.ne.s32.totalorder %s53, %s54
      %p68 = scmp.eq.s32.totalorder %s32, 1
      %p69 = por %p67, %p68
      %p71 = scmp.ne.s32.totalorder %s54, %s70
      %p72 = scmp.eq.s32.totalorder %s32, 0
      %p73 = por %p71, %p72
      %s75 = sadd.s32 %s74, 1
      %p78 = scmp.eq.s32.totalorder %s26, 1
      %p79 = scmp.ne.s32.totalorder %s74, %s76
      %p80 = scmp.eq.s32.totalorder %s26, 0
      %p81 = por %p79, %p80
      %p82 = scmp.ne.s32.totalorder %s74, %s76
      %p83 = scmp.eq.s32.totalorder %s31, 1
      %p84 = por %p82, %p83
      %p85 = scmp.ne.s32.totalorder %s76, %s77
      %p86 = scmp.eq.s32.totalorder %s31, 0
      %p87 = por %p85, %p86
      %p88 = scmp.ne.s32.totalorder %s76, %s77
      %p89 = scmp.eq.s32.totalorder %s32, 1
      %p90 = por %p88, %p89
      %p92 = scmp.ne.s32.totalorder %s77, %s91
      %p93 = scmp.eq.s32.totalorder %s32, 0
      %p94 = por %p92, %p93
      %s96 = sadd.s32 %s95, 1
      %p99 = scmp.eq.s32.totalorder %s26, 1
      %p100 = scmp.ne.s32.totalorder %s95, %s97
      %p101 = scmp.eq.s32.totalorder %s26, 0
      %p102 = por %p100, %p101
      %p103 = scmp.ne.s32.totalorder %s95, %s97
      %p104 = scmp.eq.s32.totalorder %s31, 1
      %p105 = por %p103, %p104
      %p106 = scmp.ne.s32.totalorder %s97, %s98
      %p107 = scmp.eq.s32.totalorder %s31, 0
      %p108 = por %p106, %p107
      %p109 = scmp.ne.s32.totalorder %s97, %s98
      %p110 = scmp.eq.s32.totalorder %s32, 1
      %p111 = por %p109, %p110
      %p113 = scmp.ne.s32.totalorder %s98, %s112
      %p114 = scmp.eq.s32.totalorder %s32, 0
      %p115 = por %p113, %p114
      %s117 = sadd.s32 %s116, 1
      %p120 = scmp.eq.s32.totalorder %s26, 1
      %p121 = scmp.ne.s32.totalorder %s116, %s118
      %p122 = scmp.eq.s32.totalorder %s26, 0
      %p123 = por %p121, %p122
      %p124 = scmp.ne.s32.totalorder %s116, %s118
      %p125 = scmp.eq.s32.totalorder %s31, 1
      %p126 = por %p124, %p125
      %p127 = scmp.ne.s32.totalorder %s118, %s119
      %p128 = scmp.eq.s32.totalorder %s31, 0
      %p129 = por %p127, %p128
      %p130 = scmp.ne.s32.totalorder %s118, %s119
      %p131 = scmp.eq.s32.totalorder %s32, 1
      %p132 = por %p130, %p131
      %p134 = scmp.ne.s32.totalorder %s119, %s133
      %p135 = scmp.eq.s32.totalorder %s32, 0
      %p136 = por %p134, %p135
      %s138 = sadd.s32 %s137, 1
      %p141 = scmp.eq.s32.totalorder %s26, 1
      %p142 = scmp.ne.s32.totalorder %s137, %s139
      %p143 = scmp.eq.s32.totalorder %s26, 0
      %p144 = por %p142, %p143
      %p145 = scmp.ne.s32.totalorder %s137, %s139
      %p146 = scmp.eq.s32.totalorder %s31, 1
      %p147 = por %p145, %p146
      %p148 = scmp.ne.s32.totalorder %s139, %s140
      %p149 = scmp.eq.s32.totalorder %s31, 0
      %p150 = por %p148, %p149
      %p151 = scmp.ne.s32.totalorder %s139, %s140
      %p152 = scmp.eq.s32.totalorder %s32, 1
      %p153 = por %p151, %p152
      %p155 = scmp.ne.s32.totalorder %s140, %s154
      %p156 = scmp.eq.s32.totalorder %s32, 0
      %p157 = por %p155, %p156
      %s159 = sadd.s32 %s158, 1
      %p162 = scmp.eq.s32.totalorder %s26, 1
      %p163 = scmp.ne.s32.totalorder %s158, %s160
      %p164 = scmp.eq.s32.totalorder %s26, 0
      %p165 = por %p163, %p164
      %p166 = scmp.ne.s32.totalorder %s158, %s160
      %p167 = scmp.eq.s32.totalorder %s31, 1
      %p168 = por %p166, %p167
      %p169 = scmp.ne.s32.totalorder %s160, %s161
      %p170 = scmp.eq.s32.totalorder %s31, 0
      %p171 = por %p169, %p170
      %p172 = scmp.ne.s32.totalorder %s160, %s161
      %p173 = scmp.eq.s32.totalorder %s32, 1
      %p174 = por %p172, %p173
      %p176 = scmp.ne.s32.totalorder %s161, %s175
      %p177 = scmp.eq.s32.totalorder %s32, 0
      %p178 = por %p176, %p177
      %s179 = ssub.s32 %s33, %s45
      %s180 = ssub.s32 %s34, %s41
      %s181 = sor.u32 %s179, %s180
      %p182 = scmp.eq.s32.totalorder %s181, 0
      %s184 = sadd.s32 %s183, 1
      %s185 = scalar_select %p182, %s183, %s184
      %p188 = pneg %p182
      %p189 = scmp.eq.s32.totalorder %s26, 1
      %p190 = por %p188, %p189
      %p191 = scmp.ne.s32.totalorder %s183, %s186
      %p192 = scmp.eq.s32.totalorder %s26, 0
      %p193 = por %p191, %p192
      %p194 = scmp.ne.s32.totalorder %s183, %s186
      %p195 = scmp.eq.s32.totalorder %s31, 1
      %p196 = por %p194, %p195
      %p197 = scmp.ne.s32.totalorder %s186, %s187
      %p198 = scmp.eq.s32.totalorder %s31, 0
      %p199 = por %p197, %p198
      %p200 = scmp.ne.s32.totalorder %s186, %s187
      %p201 = scmp.eq.s32.totalorder %s32, 1
      %p202 = por %p200, %p201
      %p204 = scmp.ne.s32.totalorder %s187, %s203
      %p205 = scmp.eq.s32.totalorder %s32, 0
      %p206 = por %p204, %p205
      %s207 = ssub.s32 %s33, %s45
      %s208 = ssub.s32 %s34, %s41
      %s209 = sor.u32 %s207, %s208
      %p210 = scmp.eq.s32.totalorder %s209, 0
      %s212 = sadd.s32 %s211, 1
      %s213 = scalar_select %p210, %s211, %s212
      %p216 = pneg %p210
      %p217 = scmp.eq.s32.totalorder %s26, 1
      %p218 = por %p216, %p217
      %p219 = scmp.ne.s32.totalorder %s211, %s214
      %p220 = scmp.eq.s32.totalorder %s26, 0
      %p221 = por %p219, %p220
      %p222 = scmp.ne.s32.totalorder %s211, %s214
      %p223 = scmp.eq.s32.totalorder %s31, 1
      %p224 = por %p222, %p223
      %p225 = scmp.ne.s32.totalorder %s214, %s215
      %p226 = scmp.eq.s32.totalorder %s31, 0
      %p227 = por %p225, %p226
      %p228 = scmp.ne.s32.totalorder %s214, %s215
      %p229 = scmp.eq.s32.totalorder %s32, 1
      %p230 = por %p228, %p229
      %p232 = scmp.ne.s32.totalorder %s215, %s231
      %p233 = scmp.eq.s32.totalorder %s32, 0
      %p234 = por %p232, %p233
      %s235 = ssub.s32 %s33, %s45
      %s236 = ssub.s32 %s34, %s41
      %s237 = sor.u32 %s235, %s236
      %p238 = scmp.eq.s32.totalorder %s237, 0
      %s240 = sadd.s32 %s239, 1
      %s241 = scalar_select %p238, %s239, %s240
      %p244 = pneg %p238
      %p245 = scmp.eq.s32.totalorder %s26, 1
      %p246 = por %p244, %p245
      %p247 = scmp.ne.s32.totalorder %s239, %s242
      %p248 = scmp.eq.s32.totalorder %s26, 0
      %p249 = por %p247, %p248
      %p250 = scmp.ne.s32.totalorder %s239, %s242
      %p251 = scmp.eq.s32.totalorder %s31, 1
      %p252 = por %p250, %p251
      %p253 = scmp.ne.s32.totalorder %s242, %s243
      %p254 = scmp.eq.s32.totalorder %s31, 0
      %p255 = por %p253, %p254
      %p256 = scmp.ne.s32.totalorder %s242, %s243
      %p257 = scmp.eq.s32.totalorder %s32, 1
      %p258 = por %p256, %p257
      %p260 = scmp.ne.s32.totalorder %s243, %s259
      %p261 = scmp.eq.s32.totalorder %s32, 0
      %p262 = por %p260, %p261
      %p263 = scmp.le.s32.totalorder 1, %s26
      %p264 = scmp.lt.s32.totalorder %s26, 3
      %p265 = pnand %p263, %p264
      %p266 = pneg %p265
      // Predicated region
      $region9: #{tpu_custom_call.1} parent=5 // pred_check
        _
      $region10: #{tpu_custom_call.1} parent=5 // pred_check_branch
        %268 = sbr.rel (%p265) target = $region12
      $region11: #{tpu_custom_call.1} parent=5 // pred_region
        %s269 = ssub.s32 %s26, 1
        // Predicated region
        $region13: #{tpu_custom_call.1} parent=11 // pred_check
          %p270 = pneg %p87
        $region14: #{tpu_custom_call.1} parent=11 // pred_check_branch
          %272 = sbr.rel (%p270) target = $region16
        $region15: #{tpu_custom_call.1} parent=11 // pred_region
          %s274 = ssub.s32 2048, 2048
          %275 = vsyncadd [#allocation6], %s274
          %s276 = sshll.u32 [#allocation5], 4
          %s277 = int_to_ptr.vmem [resolvable:$true] %s276
          %282 = dma.hbm_to_vmem [thread:$0]  %s1, 2048, %s277, [#allocation6], 128, 128, 8
        $region16: #{tpu_custom_call.1} parent=11 // pred_fallthru
          _
        // Predicated region
        $region17: #{tpu_custom_call.1} parent=11 // pred_check
          %p283 = pneg %p108
        $region18: #{tpu_custom_call.1} parent=11 // pred_check_branch
          %285 = sbr.rel (%p283) target = $region20
        $region19: #{tpu_custom_call.1} parent=11 // pred_region
          %s287 = ssub.s32 2048, 2048
          %288 = vsyncadd [#allocation6], %s287
          %s289 = sshll.u32 [#allocation7], 4
          %s290 = int_to_ptr.vmem [resolvable:$true] %s289
          %295 = dma.hbm_to_vmem [thread:$0]  %s2, 2048, %s290, [#allocation6], 128, 128, 8
        $region20: #{tpu_custom_call.1} parent=11 // pred_fallthru
          _
        // Predicated region
        $region21: #{tpu_custom_call.1} parent=11 // pred_check
          %p296 = pneg %p129
        $region22: #{tpu_custom_call.1} parent=11 // pred_check_branch
          %298 = sbr.rel (%p296) target = $region24
        $region23: #{tpu_custom_call.1} parent=11 // pred_region
          %s300 = ssub.s32 2048, 2048
          %301 = vsyncadd [#allocation9], %s300
          %s302 = sshll.u32 [#allocation8], 4
          %s303 = int_to_ptr.vmem [resolvable:$true] %s302
          %308 = dma.hbm_to_vmem [thread:$0]  %s3, 2048, %s303, [#allocation9], 128, 128, 8
        $region24: #{tpu_custom_call.1} parent=11 // pred_fallthru
          _
        // Predicated region
        $region25: #{tpu_custom_call.1} parent=11 // pred_check
          %p309 = pneg %p150
        $region26: #{tpu_custom_call.1} parent=11 // pred_check_branch
          %311 = sbr.rel (%p309) target = $region28
        $region27: #{tpu_custom_call.1} parent=11 // pred_region
          _
        $region28: #{tpu_custom_call.1} parent=11 // pred_fallthru
          _
        // Predicated region
        $region29: #{tpu_custom_call.1} parent=11 // pred_check
          %p312 = pneg %p171
        $region30: #{tpu_custom_call.1} parent=11 // pred_check_branch
          %314 = sbr.rel (%p312) target = $region32
        $region31: #{tpu_custom_call.1} parent=11 // pred_region
          _
        $region32: #{tpu_custom_call.1} parent=11 // pred_fallthru
          _
      $region12: #{tpu_custom_call.1} parent=5 // pred_fallthru
        _
      %p315 = scmp.lt.s32.totalorder %s26, 2
      // Predicated region
      $region33: #{tpu_custom_call.1} parent=5 // pred_check
        %p316 = pneg %p315
      $region34: #{tpu_custom_call.1} parent=5 // pred_check_branch
        %318 = sbr.rel (%p316) target = $region36
      $region35: #{tpu_custom_call.1} parent=5 // pred_region
        // Predicated region
        $region37: #{tpu_custom_call.1} parent=35 // pred_check
          %p319 = pneg %p60
        $region38: #{tpu_custom_call.1} parent=35 // pred_check_branch
          %321 = sbr.rel (%p319) target = $region40
        $region39: #{tpu_custom_call.1} parent=35 // pred_region
          %s322 = sand.u32 %s50, 1
          %s323 = scalar_lea.sflag [#allocation3], %s322
          %s324 = sand.u32 %s50, 1
          %s325 = smul.addr %s324, 64
          %s326 = scalar_lea.vmem [#allocation2], %s325
          %s327 = smul.u32 8, %s34
          %s329 = ssub.s32 1024, 1024
          %330 = vsyncadd %s323, %s329
          %s331 = smul.addr %s33, 8
          %s332 = sadd.s32 %s327, %s331
          %s333 = smul.addr %s332, 128
          %s334 = scalar_lea.hbm %s0, %s333
          %s335 = sshll.u32 %s326, 4
          %s336 = int_to_ptr.vmem [resolvable:$true] %s335
          %341 = dma.hbm_to_vmem [thread:$0]  %s334, 1024, %s336, %s323, 128, 128, 8
        $region40: #{tpu_custom_call.1} parent=35 // pred_fallthru
          _
      $region36: #{tpu_custom_call.1} parent=5 // pred_fallthru
        _
      %p342 = scmp.le.s32.totalorder 1, %s26
      %p343 = scmp.lt.s32.totalorder %s26, 3
      %p344 = pnand %p342, %p343
      %p345 = pneg %p344
      // Predicated region
      $region41: #{tpu_custom_call.1} parent=5 // pred_check
        _
      $region42: #{tpu_custom_call.1} parent=5 // pred_check_branch
        %347 = sbr.rel (%p344) target = $region44
      $region43: #{tpu_custom_call.1} parent=5 // pred_region
        %s348 = ssub.s32 %s26, 1
        %s349 = sand.u32 %s53, 1
        %s350 = scalar_lea.sflag [#allocation3], %s349
        %s351 = sand.u32 %s53, 1
        %s352 = smul.addr %s351, 64
        %s353 = scalar_lea.vmem [#allocation2], %s352
        // Predicated region
        $region45: #{tpu_custom_call.1} parent=43 // pred_check
          %p354 = pneg %p66
        $region46: #{tpu_custom_call.1} parent=43 // pred_check_branch
          %356 = sbr.rel (%p354) target = $region48
        $region47: #{tpu_custom_call.1} parent=43 // pred_region
          %357 = dma.done %s350, 1024
        $region48: #{tpu_custom_call.1} parent=43 // pred_fallthru
          _
        // Predicated region
        $region49: #{tpu_custom_call.1} parent=43 // pred_check
          %p358 = pneg %p87
        $region50: #{tpu_custom_call.1} parent=43 // pred_check_branch
          %360 = sbr.rel (%p358) target = $region52
        $region51: #{tpu_custom_call.1} parent=43 // pred_region
          %361 = dma.done [#allocation6], 2048
        $region52: #{tpu_custom_call.1} parent=43 // pred_fallthru
          _
        // Predicated region
        $region53: #{tpu_custom_call.1} parent=43 // pred_check
          %p362 = pneg %p108
        $region54: #{tpu_custom_call.1} parent=43 // pred_check_branch
          %364 = sbr.rel (%p362) target = $region56
        $region55: #{tpu_custom_call.1} parent=43 // pred_region
          %365 = dma.done [#allocation6], 2048
        $region56: #{tpu_custom_call.1} parent=43 // pred_fallthru
          _
        // Predicated region
        $region57: #{tpu_custom_call.1} parent=43 // pred_check
          %p366 = pneg %p129
        $region58: #{tpu_custom_call.1} parent=43 // pred_check_branch
          %368 = sbr.rel (%p366) target = $region60
        $region59: #{tpu_custom_call.1} parent=43 // pred_region
          %369 = dma.done [#allocation9], 2048
        $region60: #{tpu_custom_call.1} parent=43 // pred_fallthru
          _
        %s370 = sand.u32 %s53, 1
        %s371 = scalar_lea.sflag [#allocation3], %s370
        %s372 = sand.u32 %s53, 1
        %s373 = smul.addr %s372, 64
        %s374 = scalar_lea.vmem [#allocation2], %s373
        %p375 = pneg %p66
        %p376 = pneg %p63
        %p377 = pneg %p87
        %p378 = pneg %p84
        %p379 = pneg %p108
        %p380 = pneg %p105
        %p381 = pneg %p129
        %p382 = pneg %p126
        %p383 = pneg %p150
        %p384 = pneg %p147
        %p385 = pneg %p171
        %p386 = pneg %p168
        %p387 = pneg %p199
        %p388 = pneg %p196
        %s389 = sand.u32 %s186, 1
        %s390 = scalar_lea.sflag [#allocation4], %s389
        %s391 = sand.u32 %s186, 1
        %s392 = smul.addr %s391, 64
        %s393 = scalar_lea.vmem [#allocation10], %s392
        %p394 = pneg %p227
        %p395 = pneg %p224
        %s396 = sand.u32 %s31, 1
        %s397 = scalar_lea.sflag [#allocation12], %s396
        %s398 = sand.u32 %s214, 1
        %s399 = smul.addr %s398, 64
        %s400 = scalar_lea.vmem [#allocation11], %s399
        %p401 = pneg %p255
        %p402 = pneg %p252
        %s403 = sand.u32 %s31, 1
        %s404 = scalar_lea.sflag [#allocation12], %s403
        %s405 = sand.u32 %s242, 1
        %s406 = smul.addr %s405, 64
        %s407 = scalar_lea.vmem [#allocation13], %s406
        %s408 = smul.u32 8, %s36
        %s409 = smul.u32 8, %s36
        %s410 = smul.u32 8, %s36
        %s411 = smul.u32 8, %s36
        %v412 = vld [vmem:[%s353] sm:$0xff]
        %v413 = vld [vmem:[%s353 + $0x8] sm:$0xff]
        %v414 = vld [vmem:[%s353 + $0x10] sm:$0xff]
        %v415 = vld [vmem:[%s353 + $0x18] sm:$0xff]
        %v416 = vld [vmem:[%s353 + $0x20] sm:$0xff]
        %v417 = vld [vmem:[%s353 + $0x28] sm:$0xff]
        %v418 = vld [vmem:[%s353 + $0x30] sm:$0xff]
        %v419 = vld [vmem:[%s353 + $0x38] sm:$0xff]
        %v420 = vld [vmem:[#allocation5] sm:$0xff]
        %v421 = vld [vmem:[#allocation5 + $0x8] sm:$0xff]
        %v422 = vld [vmem:[#allocation5 + $0x10] sm:$0xff]
        %v423 = vld [vmem:[#allocation5 + $0x18] sm:$0xff]
        %v424 = vld [vmem:[#allocation5 + $0x20] sm:$0xff]
        %v425 = vld [vmem:[#allocation5 + $0x28] sm:$0xff]
        %v426 = vld [vmem:[#allocation5 + $0x30] sm:$0xff]
        %v427 = vld [vmem:[#allocation5 + $0x38] sm:$0xff]
        %v428 = vld [vmem:[#allocation5 + $0x40] sm:$0xff]
        %v429 = vld [vmem:[#allocation5 + $0x48] sm:$0xff]
        %v430 = vld [vmem:[#allocation5 + $0x50] sm:$0xff]
        %v431 = vld [vmem:[#allocation5 + $0x58] sm:$0xff]
        %v432 = vld [vmem:[#allocation5 + $0x60] sm:$0xff]
        %v433 = vld [vmem:[#allocation5 + $0x68] sm:$0xff]
        %v434 = vld [vmem:[#allocation5 + $0x70] sm:$0xff]
        %v435 = vld [vmem:[#allocation5 + $0x78] sm:$0xff]
        %v436 = vld [vmem:[%s4] sm:$0x1]
        %v438 = vlaneseq
        %v439 = vshrl.u32 %v438, 7
        %v440 = vsub.s32 0, %v439
        %v441 = vrot.slane %v436, %v440
        %443 = vmatprep.subr.mxu0 0.0
        %444 = vmatpush1.msra.mxu0 %v435
        %445 = vmatprep.subr.mxu0 0.0
        %446 = vmatpush1.msra.mxu0 %v434
        %447 = vmatprep.subr.mxu0 0.0
        %448 = vmatpush1.msra.mxu0 %v433
        %449 = vmatprep.subr.mxu0 0.0
        %450 = vmatpush1.msra.mxu0 %v432
        %451 = vmatprep.subr.mxu0 0.0
        %452 = vmatpush1.msra.mxu0 %v431
        %453 = vmatprep.subr.mxu0 0.0
        %454 = vmatpush1.msra.mxu0 %v430
        %455 = vmatprep.subr.mxu0 0.0
        %456 = vmatpush1.msra.mxu0 %v429
        %457 = vmatprep.subr.mxu0 0.0
        %458 = vmatpush1.msra.mxu0 %v428
        %459 = vmatprep.subr.mxu0 0.0
        %460 = vmatpush1.msra.mxu0 %v427
        %461 = vmatprep.subr.mxu0 0.0
        %462 = vmatpush1.msra.mxu0 %v426
        %463 = vmatprep.subr.mxu0 0.0
        %464 = vmatpush1.msra.mxu0 %v425
        %465 = vmatprep.subr.mxu0 0.0
        %466 = vmatpush1.msra.mxu0 %v424
        %467 = vmatprep.subr.mxu0 0.0
        %468 = vmatpush1.msra.mxu0 %v423
        %469 = vmatprep.subr.mxu0 0.0
        %470 = vmatpush1.msra.mxu0 %v422
        %471 = vmatprep.subr.mxu0 0.0
        %472 = vmatpush1.msra.mxu0 %v421
        %473 = vmatprep.subr.mxu0 0.0
        %474 = vmatpush1.msra.mxu0 %v420
        %475 = vmatprep.subr.mxu0 0.0
        %476 = vmatpush2.msra.mxu0 0.0
        %477 = vmatprep.subr.mxu0 0.0
        %478 = vmatpush2.msra.mxu0 0.0
        %479 = vmatprep.subr.mxu0 0.0
        %480 = vmatpush2.msra.mxu0 0.0
        %481 = vmatprep.subr.mxu0 0.0
        %482 = vmatpush2.msra.mxu0 0.0
        %483 = vmatprep.subr.mxu0 0.0
        %484 = vmatpush2.msra.mxu0 0.0
        %485 = vmatprep.subr.mxu0 0.0
        %486 = vmatpush2.msra.mxu0 0.0
        %487 = vmatprep.subr.mxu0 0.0
        %488 = vmatpush2.msra.mxu0 0.0
        %489 = vmatprep.subr.mxu0 0.0
        %490 = vmatpush2.msra.mxu0 0.0
        %491 = vmatprep.subr.mxu0 0.0
        %492 = vmatpush2.msra.mxu0 0.0
        %493 = vmatprep.subr.mxu0 0.0
        %494 = vmatpush2.msra.mxu0 0.0
        %495 = vmatprep.subr.mxu0 0.0
        %496 = vmatpush2.msra.mxu0 0.0
        %497 = vmatprep.subr.mxu0 0.0
        %498 = vmatpush2.msra.mxu0 0.0
        %499 = vmatprep.subr.mxu0 0.0
        %500 = vmatpush2.msra.mxu0 0.0
        %501 = vmatprep.subr.mxu0 0.0
        %502 = vmatpush2.msra.mxu0 0.0
        %503 = vmatprep.subr.mxu0 0.0
        %504 = vmatpush2.msra.mxu0 0.0
        %505 = vmatprep.subr.mxu0 0.0
        %506 = vmatpush2.msra.mxu0 0.0
        %507 = vmatprep.mubr.f32.mxu0 0.0
        %508 = vmatmul.mubr.f32.gmra.mxu0 %v412
        %v509 = vpop.f32.mrf.mxu0
        %v510 = vadd.f32 %v441, %v509
        %v511 = vpop.f32.mrf.mxu0
        %512 = vmatprep.mubr.f32.mxu0 0.0
        %513 = vmatmul.mubr.f32.gmra.mxu0 %v413
        %v514 = vpop.f32.mrf.mxu0
        %v515 = vadd.f32 %v441, %v514
        %v516 = vpop.f32.mrf.mxu0
        %517 = vmatprep.mubr.f32.mxu0 0.0
        %518 = vmatmul.mubr.f32.gmra.mxu0 %v414
        %v519 = vpop.f32.mrf.mxu0
        %v520 = vadd.f32 %v441, %v519
        %v521 = vpop.f32.mrf.mxu0
        %522 = vmatprep.mubr.f32.mxu0 0.0
        %523 = vmatmul.mubr.f32.gmra.mxu0 %v415
        %v524 = vpop.f32.mrf.mxu0
        %v525 = vadd.f32 %v441, %v524
        %v526 = vpop.f32.mrf.mxu0
        %527 = vmatprep.mubr.f32.mxu0 0.0
        %528 = vmatmul.mubr.f32.gmra.mxu0 %v416
        %v529 = vpop.f32.mrf.mxu0
        %v530 = vadd.f32 %v441, %v529
        %v531 = vpop.f32.mrf.mxu0
        %532 = vmatprep.mubr.f32.mxu0 0.0
        %533 = vmatmul.mubr.f32.gmra.mxu0 %v417
        %v534 = vpop.f32.mrf.mxu0
        %v535 = vadd.f32 %v441, %v534
        %v536 = vpop.f32.mrf.mxu0
        %537 = vmatprep.mubr.f32.mxu0 0.0
        %538 = vmatmul.mubr.f32.gmra.mxu0 %v418
        %v539 = vpop.f32.mrf.mxu0
        %v540 = vadd.f32 %v441, %v539
        %v541 = vpop.f32.mrf.mxu0
        %542 = vmatprep.mubr.f32.mxu0 0.0
        %543 = vmatmul.mubr.f32.gmra.mxu0 %v419
        %v544 = vpop.f32.mrf.mxu0
        %v545 = vadd.f32 %v441, %v544
        %v546 = vpop.f32.mrf.mxu0
        %547 = vdwg.mxu0
        %v548 = vld [vmem:[#allocation7] sm:$0xff]
        %v549 = vld [vmem:[#allocation7 + $0x8] sm:$0xff]
        %v550 = vld [vmem:[#allocation7 + $0x10] sm:$0xff]
        %v551 = vld [vmem:[#allocation7 + $0x18] sm:$0xff]
        %v552 = vld [vmem:[#allocation7 + $0x20] sm:$0xff]
        %v553 = vld [vmem:[#allocation7 + $0x28] sm:$0xff]
        %v554 = vld [vmem:[#allocation7 + $0x30] sm:$0xff]
        %v555 = vld [vmem:[#allocation7 + $0x38] sm:$0xff]
        %v556 = vld [vmem:[#allocation7 + $0x40] sm:$0xff]
        %v557 = vld [vmem:[#allocation7 + $0x48] sm:$0xff]
        %v558 = vld [vmem:[#allocation7 + $0x50] sm:$0xff]
        %v559 = vld [vmem:[#allocation7 + $0x58] sm:$0xff]
        %v560 = vld [vmem:[#allocation7 + $0x60] sm:$0xff]
        %v561 = vld [vmem:[#allocation7 + $0x68] sm:$0xff]
        %v562 = vld [vmem:[#allocation7 + $0x70] sm:$0xff]
        %v563 = vld [vmem:[#allocation7 + $0x78] sm:$0xff]
        %564 = vmatprep.subr.mxu0 0.0
        %565 = vmatpush1.msra.mxu0 %v563
        %566 = vmatprep.subr.mxu0 0.0
        %567 = vmatpush1.msra.mxu0 %v562
        %568 = vmatprep.subr.mxu0 0.0
        %569 = vmatpush1.msra.mxu0 %v561
        %570 = vmatprep.subr.mxu0 0.0
        %571 = vmatpush1.msra.mxu0 %v560
        %572 = vmatprep.subr.mxu0 0.0
        %573 = vmatpush1.msra.mxu0 %v559
        %574 = vmatprep.subr.mxu0 0.0
        %575 = vmatpush1.msra.mxu0 %v558
        %576 = vmatprep.subr.mxu0 0.0
        %577 = vmatpush1.msra.mxu0 %v557
        %578 = vmatprep.subr.mxu0 0.0
        %579 = vmatpush1.msra.mxu0 %v556
        %580 = vmatprep.subr.mxu0 0.0
        %581 = vmatpush1.msra.mxu0 %v555
        %582 = vmatprep.subr.mxu0 0.0
        %583 = vmatpush1.msra.mxu0 %v554
        %584 = vmatprep.subr.mxu0 0.0
        %585 = vmatpush1.msra.mxu0 %v553
        %586 = vmatprep.subr.mxu0 0.0
        %587 = vmatpush1.msra.mxu0 %v552
        %588 = vmatprep.subr.mxu0 0.0
        %589 = vmatpush1.msra.mxu0 %v551
        %590 = vmatprep.subr.mxu0 0.0
        %591 = vmatpush1.msra.mxu0 %v550
        %592 = vmatprep.subr.mxu0 0.0
        %593 = vmatpush1.msra.mxu0 %v549
        %594 = vmatprep.subr.mxu0 0.0
        %595 = vmatpush1.msra.mxu0 %v548
        %596 = vmatprep.subr.mxu0 0.0
        %597 = vmatpush2.msra.mxu0 0.0
        %598 = vmatprep.subr.mxu0 0.0
        %599 = vmatpush2.msra.mxu0 0.0
        %600 = vmatprep.subr.mxu0 0.0
        %601 = vmatpush2.msra.mxu0 0.0
        %602 = vmatprep.subr.mxu0 0.0
        %603 = vmatpush2.msra.mxu0 0.0
        %604 = vmatprep.subr.mxu0 0.0
        %605 = vmatpush2.msra.mxu0 0.0
        %606 = vmatprep.subr.mxu0 0.0
        %607 = vmatpush2.msra.mxu0 0.0
        %608 = vmatprep.subr.mxu0 0.0
        %609 = vmatpush2.msra.mxu0 0.0
        %610 = vmatprep.subr.mxu0 0.0
        %611 = vmatpush2.msra.mxu0 0.0
        %612 = vmatprep.subr.mxu0 0.0
        %613 = vmatpush2.msra.mxu0 0.0
        %614 = vmatprep.subr.mxu0 0.0
        %615 = vmatpush2.msra.mxu0 0.0
        %616 = vmatprep.subr.mxu0 0.0
        %617 = vmatpush2.msra.mxu0 0.0
        %618 = vmatprep.subr.mxu0 0.0
        %619 = vmatpush2.msra.mxu0 0.0
        %620 = vmatprep.subr.mxu0 0.0
        %621 = vmatpush2.msra.mxu0 0.0
        %622 = vmatprep.subr.mxu0 0.0
        %623 = vmatpush2.msra.mxu0 0.0
        %624 = vmatprep.subr.mxu0 0.0
        %625 = vmatpush2.msra.mxu0 0.0
        %626 = vmatprep.subr.mxu0 0.0
        %627 = vmatpush2.msra.mxu0 0.0
        %628 = vmatprep.mubr.f32.mxu0 0.0
        %629 = vmatmul.mubr.f32.gmra.mxu0 %v412
        %v630 = vpop.f32.mrf.mxu0
        %v631 = vadd.f32 0.0, %v630
        %v632 = vpop.f32.mrf.mxu0
        %633 = vmatprep.mubr.f32.mxu0 0.0
        %634 = vmatmul.mubr.f32.gmra.mxu0 %v413
        %v635 = vpop.f32.mrf.mxu0
        %v636 = vadd.f32 0.0, %v635
        %v637 = vpop.f32.mrf.mxu0
        %638 = vmatprep.mubr.f32.mxu0 0.0
        %639 = vmatmul.mubr.f32.gmra.mxu0 %v414
        %v640 = vpop.f32.mrf.mxu0
        %v641 = vadd.f32 0.0, %v640
        %v642 = vpop.f32.mrf.mxu0
        %643 = vmatprep.mubr.f32.mxu0 0.0
        %644 = vmatmul.mubr.f32.gmra.mxu0 %v415
        %v645 = vpop.f32.mrf.mxu0
        %v646 = vadd.f32 0.0, %v645
        %v647 = vpop.f32.mrf.mxu0
        %648 = vmatprep.mubr.f32.mxu0 0.0
        %649 = vmatmul.mubr.f32.gmra.mxu0 %v416
        %v650 = vpop.f32.mrf.mxu0
        %v651 = vadd.f32 0.0, %v650
        %v652 = vpop.f32.mrf.mxu0
        %653 = vmatprep.mubr.f32.mxu0 0.0
        %654 = vmatmul.mubr.f32.gmra.mxu0 %v417
        %v655 = vpop.f32.mrf.mxu0
        %v656 = vadd.f32 0.0, %v655
        %v657 = vpop.f32.mrf.mxu0
        %658 = vmatprep.mubr.f32.mxu0 0.0
        %659 = vmatmul.mubr.f32.gmra.mxu0 %v418
        %v660 = vpop.f32.mrf.mxu0
        %v661 = vadd.f32 0.0, %v660
        %v662 = vpop.f32.mrf.mxu0
        %663 = vmatprep.mubr.f32.mxu0 0.0
        %664 = vmatmul.mubr.f32.gmra.mxu0 %v419
        %v665 = vpop.f32.mrf.mxu0
        %v666 = vadd.f32 0.0, %v665
        %v667 = vpop.f32.mrf.mxu0
        %668 = vdwg.mxu0
        %v669 = vld [vmem:[#allocation8] sm:$0xff]
        %v670 = vld [vmem:[#allocation8 + $0x8] sm:$0xff]
        %v671 = vld [vmem:[#allocation8 + $0x10] sm:$0xff]
        %v672 = vld [vmem:[#allocation8 + $0x18] sm:$0xff]
        %v673 = vld [vmem:[#allocation8 + $0x20] sm:$0xff]
        %v674 = vld [vmem:[#allocation8 + $0x28] sm:$0xff]
        %v675 = vld [vmem:[#allocation8 + $0x30] sm:$0xff]
        %v676 = vld [vmem:[#allocation8 + $0x38] sm:$0xff]
        %v677 = vld [vmem:[#allocation8 + $0x40] sm:$0xff]
        %v678 = vld [vmem:[#allocation8 + $0x48] sm:$0xff]
        %v679 = vld [vmem:[#allocation8 + $0x50] sm:$0xff]
        %v680 = vld [vmem:[#allocation8 + $0x58] sm:$0xff]
        %v681 = vld [vmem:[#allocation8 + $0x60] sm:$0xff]
        %v682 = vld [vmem:[#allocation8 + $0x68] sm:$0xff]
        %v683 = vld [vmem:[#allocation8 + $0x70] sm:$0xff]
        %v684 = vld [vmem:[#allocation8 + $0x78] sm:$0xff]
        %v685 = vld [vmem:[%s5] sm:$0x1]
        %v687 = vlaneseq
        %v688 = vshrl.u32 %v687, 7
        %v689 = vsub.s32 0, %v688
        %v690 = vrot.slane %v685, %v689
        %692 = vmatprep.subr.mxu0 0.0
        %693 = vmatpush1.msra.mxu0 %v684
        %694 = vmatprep.subr.mxu0 0.0
        %695 = vmatpush1.msra.mxu0 %v683
        %696 = vmatprep.subr.mxu0 0.0
        %697 = vmatpush1.msra.mxu0 %v682
        %698 = vmatprep.subr.mxu0 0.0
        %699 = vmatpush1.msra.mxu0 %v681
        %700 = vmatprep.subr.mxu0 0.0
        %701 = vmatpush1.msra.mxu0 %v680
        %702 = vmatprep.subr.mxu0 0.0
        %703 = vmatpush1.msra.mxu0 %v679
        %704 = vmatprep.subr.mxu0 0.0
        %705 = vmatpush1.msra.mxu0 %v678
        %706 = vmatprep.subr.mxu0 0.0
        %707 = vmatpush1.msra.mxu0 %v677
        %708 = vmatprep.subr.mxu0 0.0
        %709 = vmatpush1.msra.mxu0 %v676
        %710 = vmatprep.subr.mxu0 0.0
        %711 = vmatpush1.msra.mxu0 %v675
        %712 = vmatprep.subr.mxu0 0.0
        %713 = vmatpush1.msra.mxu0 %v674
        %714 = vmatprep.subr.mxu0 0.0
        %715 = vmatpush1.msra.mxu0 %v673
        %716 = vmatprep.subr.mxu0 0.0
        %717 = vmatpush1.msra.mxu0 %v672
        %718 = vmatprep.subr.mxu0 0.0
        %719 = vmatpush1.msra.mxu0 %v671
        %720 = vmatprep.subr.mxu0 0.0
        %721 = vmatpush1.msra.mxu0 %v670
        %722 = vmatprep.subr.mxu0 0.0
        %723 = vmatpush1.msra.mxu0 %v669
        %724 = vmatprep.subr.mxu0 0.0
        %725 = vmatpush2.msra.mxu0 0.0
        %726 = vmatprep.subr.mxu0 0.0
        %727 = vmatpush2.msra.mxu0 0.0
        %728 = vmatprep.subr.mxu0 0.0
        %729 = vmatpush2.msra.mxu0 0.0
        %730 = vmatprep.subr.mxu0 0.0
        %731 = vmatpush2.msra.mxu0 0.0
        %732 = vmatprep.subr.mxu0 0.0
        %733 = vmatpush2.msra.mxu0 0.0
        %734 = vmatprep.subr.mxu0 0.0
        %735 = vmatpush2.msra.mxu0 0.0
        %736 = vmatprep.subr.mxu0 0.0
        %737 = vmatpush2.msra.mxu0 0.0
        %738 = vmatprep.subr.mxu0 0.0
        %739 = vmatpush2.msra.mxu0 0.0
        %740 = vmatprep.subr.mxu0 0.0
        %741 = vmatpush2.msra.mxu0 0.0
        %742 = vmatprep.subr.mxu0 0.0
        %743 = vmatpush2.msra.mxu0 0.0
        %744 = vmatprep.subr.mxu0 0.0
        %745 = vmatpush2.msra.mxu0 0.0
        %746 = vmatprep.subr.mxu0 0.0
        %747 = vmatpush2.msra.mxu0 0.0
        %748 = vmatprep.subr.mxu0 0.0
        %749 = vmatpush2.msra.mxu0 0.0
        %750 = vmatprep.subr.mxu0 0.0
        %751 = vmatpush2.msra.mxu0 0.0
        %752 = vmatprep.subr.mxu0 0.0
        %753 = vmatpush2.msra.mxu0 0.0
        %754 = vmatprep.subr.mxu0 0.0
        %755 = vmatpush2.msra.mxu0 0.0
        %756 = vmatprep.mubr.f32.mxu0 0.0
        %757 = vmatmul.mubr.f32.gmra.mxu0 %v412
        %v758 = vpop.f32.mrf.mxu0
        %v759 = vadd.f32 %v690, %v758
        %v760 = vpop.f32.mrf.mxu0
        %761 = vmatprep.mubr.f32.mxu0 0.0
        %762 = vmatmul.mubr.f32.gmra.mxu0 %v413
        %v763 = vpop.f32.mrf.mxu0
        %v764 = vadd.f32 %v690, %v763
        %v765 = vpop.f32.mrf.mxu0
        %766 = vmatprep.mubr.f32.mxu0 0.0
        %767 = vmatmul.mubr.f32.gmra.mxu0 %v414
        %v768 = vpop.f32.mrf.mxu0
        %v769 = vadd.f32 %v690, %v768
        %v770 = vpop.f32.mrf.mxu0
        %771 = vmatprep.mubr.f32.mxu0 0.0
        %772 = vmatmul.mubr.f32.gmra.mxu0 %v415
        %v773 = vpop.f32.mrf.mxu0
        %v774 = vadd.f32 %v690, %v773
        %v775 = vpop.f32.mrf.mxu0
        %776 = vmatprep.mubr.f32.mxu0 0.0
        %777 = vmatmul.mubr.f32.gmra.mxu0 %v416
        %v778 = vpop.f32.mrf.mxu0
        %v779 = vadd.f32 %v690, %v778
        %v780 = vpop.f32.mrf.mxu0
        %781 = vmatprep.mubr.f32.mxu0 0.0
        %782 = vmatmul.mubr.f32.gmra.mxu0 %v417
        %v783 = vpop.f32.mrf.mxu0
        %v784 = vadd.f32 %v690, %v783
        %v785 = vpop.f32.mrf.mxu0
        %786 = vmatprep.mubr.f32.mxu0 0.0
        %787 = vmatmul.mubr.f32.gmra.mxu0 %v418
        %v788 = vpop.f32.mrf.mxu0
        %v789 = vadd.f32 %v690, %v788
        %v790 = vpop.f32.mrf.mxu0
        %791 = vmatprep.mubr.f32.mxu0 0.0
        %792 = vmatmul.mubr.f32.gmra.mxu0 %v419
        %v793 = vpop.f32.mrf.mxu0
        %v794 = vadd.f32 %v690, %v793
        %v795 = vpop.f32.mrf.mxu0
        %796 = vdwg.mxu0
        %797 = vst [vmem:[%s393] sm:$0xff] %v510
        %798 = vst [vmem:[%s393 + $0x8] sm:$0xff] %v515
        %799 = vst [vmem:[%s393 + $0x10] sm:$0xff] %v520
        %800 = vst [vmem:[%s393 + $0x18] sm:$0xff] %v525
        %801 = vst [vmem:[%s393 + $0x20] sm:$0xff] %v530
        %802 = vst [vmem:[%s393 + $0x28] sm:$0xff] %v535
        %803 = vst [vmem:[%s393 + $0x30] sm:$0xff] %v540
        %804 = vst [vmem:[%s393 + $0x38] sm:$0xff] %v545
        %805 = vst [vmem:[%s400] sm:$0xff] %v631
        %806 = vst [vmem:[%s400 + $0x8] sm:$0xff] %v636
        %807 = vst [vmem:[%s400 + $0x10] sm:$0xff] %v641
        %808 = vst [vmem:[%s400 + $0x18] sm:$0xff] %v646
        %809 = vst [vmem:[%s400 + $0x20] sm:$0xff] %v651
        %810 = vst [vmem:[%s400 + $0x28] sm:$0xff] %v656
        %811 = vst [vmem:[%s400 + $0x30] sm:$0xff] %v661
        %812 = vst [vmem:[%s400 + $0x38] sm:$0xff] %v666
        %813 = vst [vmem:[%s407] sm:$0xff] %v759
        %814 = vst [vmem:[%s407 + $0x8] sm:$0xff] %v764
        %815 = vst [vmem:[%s407 + $0x10] sm:$0xff] %v769
        %816 = vst [vmem:[%s407 + $0x18] sm:$0xff] %v774
        %817 = vst [vmem:[%s407 + $0x20] sm:$0xff] %v779
        %818 = vst [vmem:[%s407 + $0x28] sm:$0xff] %v784
        %819 = vst [vmem:[%s407 + $0x30] sm:$0xff] %v789
        %820 = vst [vmem:[%s407 + $0x38] sm:$0xff] %v794
        %s821 = sand.u32 %s186, 1
        %s822 = scalar_lea.sflag [#allocation4], %s821
        %s823 = sand.u32 %s186, 1
        %s824 = smul.addr %s823, 64
        %s825 = scalar_lea.vmem [#allocation10], %s824
        %s826 = sand.u32 %s31, 1
        %s827 = scalar_lea.sflag [#allocation12], %s826
        %s828 = sand.u32 %s214, 1
        %s829 = smul.addr %s828, 64
        %s830 = scalar_lea.vmem [#allocation11], %s829
        %s831 = sand.u32 %s31, 1
        %s832 = scalar_lea.sflag [#allocation12], %s831
        %s833 = sand.u32 %s242, 1
        %s834 = smul.addr %s833, 64
        %s835 = scalar_lea.vmem [#allocation13], %s834
        // Predicated region
        $region61: #{tpu_custom_call.1} parent=43 // pred_check
          %p836 = pneg %p196
        $region62: #{tpu_custom_call.1} parent=43 // pred_check_branch
          %838 = sbr.rel (%p836) target = $region64
        $region63: #{tpu_custom_call.1} parent=43 // pred_region
          %s839 = smul.u32 8, %s36
          %s841 = ssub.s32 1024, 1024
          %842 = vsyncadd %s822, %s841
          %s843 = smul.addr %s35, 8
          %s844 = sadd.s32 %s839, %s843
          %s845 = smul.addr %s844, 128
          %s846 = scalar_lea.hbm %s6, %s845
          %s847 = sshll.u32 %s825, 4
          %s848 = int_to_ptr.vmem [resolvable:$true] %s847
          %853 = dma.vmem_to_hbm [thread:$0]  %s848, 1024, %s846, %s822, 128, 128, 8
        $region64: #{tpu_custom_call.1} parent=43 // pred_fallthru
          _
        // Predicated region
        $region65: #{tpu_custom_call.1} parent=43 // pred_check
          %p854 = pneg %p224
        $region66: #{tpu_custom_call.1} parent=43 // pred_check_branch
          %856 = sbr.rel (%p854) target = $region68
        $region67: #{tpu_custom_call.1} parent=43 // pred_region
          %s857 = smul.u32 8, %s36
          %s859 = ssub.s32 1024, 1024
          %860 = vsyncadd %s827, %s859
          %s861 = smul.addr %s35, 8
          %s862 = sadd.s32 %s857, %s861
          %s863 = smul.addr %s862, 128
          %s864 = scalar_lea.hbm %s7, %s863
          %s865 = sshll.u32 %s830, 4
          %s866 = int_to_ptr.vmem [resolvable:$true] %s865
          %871 = dma.vmem_to_hbm [thread:$0]  %s866, 1024, %s864, %s827, 128, 128, 8
        $region68: #{tpu_custom_call.1} parent=43 // pred_fallthru
          _
        // Predicated region
        $region69: #{tpu_custom_call.1} parent=43 // pred_check
          %p872 = pneg %p252
        $region70: #{tpu_custom_call.1} parent=43 // pred_check_branch
          %874 = sbr.rel (%p872) target = $region72
        $region71: #{tpu_custom_call.1} parent=43 // pred_region
          %s875 = smul.u32 8, %s36
          %s877 = ssub.s32 1024, 1024
          %878 = vsyncadd %s832, %s877
          %s879 = smul.addr %s35, 8
          %s880 = sadd.s32 %s875, %s879
          %s881 = smul.addr %s880, 128
          %s882 = scalar_lea.hbm %s8, %s881
          %s883 = sshll.u32 %s835, 4
          %s884 = int_to_ptr.vmem [resolvable:$true] %s883
          %889 = dma.vmem_to_hbm [thread:$0]  %s884, 1024, %s882, %s832, 128, 128, 8
        $region72: #{tpu_custom_call.1} parent=43 // pred_fallthru
          _
      $region44: #{tpu_custom_call.1} parent=5 // pred_fallthru
        _
      %p890 = scmp.le.s32.totalorder 2, %s26
      // Predicated region
      $region73: #{tpu_custom_call.1} parent=5 // pred_check
        %p891 = pneg %p890
      $region74: #{tpu_custom_call.1} parent=5 // pred_check_branch
        %893 = sbr.rel (%p891) target = $region76
      $region75: #{tpu_custom_call.1} parent=5 // pred_region
        %s894 = ssub.s32 %s26, 2
        // Predicated region
        $region77: #{tpu_custom_call.1} parent=75 // pred_check
          %p895 = pneg %p202
        $region78: #{tpu_custom_call.1} parent=75 // pred_check_branch
          %897 = sbr.rel (%p895) target = $region80
        $region79: #{tpu_custom_call.1} parent=75 // pred_region
          %s898 = sand.u32 %s187, 1
          %s899 = scalar_lea.sflag [#allocation4], %s898
          %s900 = sand.u32 %s187, 1
          %s901 = smul.addr %s900, 64
          %s902 = scalar_lea.vmem [#allocation10], %s901
          %903 = dma.done %s899, 1024
        $region80: #{tpu_custom_call.1} parent=75 // pred_fallthru
          _
        // Predicated region
        $region81: #{tpu_custom_call.1} parent=75 // pred_check
          %p904 = pneg %p230
        $region82: #{tpu_custom_call.1} parent=75 // pred_check_branch
          %906 = sbr.rel (%p904) target = $region84
        $region83: #{tpu_custom_call.1} parent=75 // pred_region
          %s907 = sand.u32 %s32, 1
          %s908 = scalar_lea.sflag [#allocation12], %s907
          %s909 = sand.u32 %s215, 1
          %s910 = smul.addr %s909, 64
          %s911 = scalar_lea.vmem [#allocation11], %s910
          %912 = dma.done %s908, 1024
        $region84: #{tpu_custom_call.1} parent=75 // pred_fallthru
          _
        // Predicated region
        $region85: #{tpu_custom_call.1} parent=75 // pred_check
          %p913 = pneg %p258
        $region86: #{tpu_custom_call.1} parent=75 // pred_check_branch
          %915 = sbr.rel (%p913) target = $region88
        $region87: #{tpu_custom_call.1} parent=75 // pred_region
          %s916 = sand.u32 %s32, 1
          %s917 = scalar_lea.sflag [#allocation12], %s916
          %s918 = sand.u32 %s243, 1
          %s919 = smul.addr %s918, 64
          %s920 = scalar_lea.vmem [#allocation13], %s919
          %921 = dma.done %s917, 1024
        $region88: #{tpu_custom_call.1} parent=75 // pred_fallthru
          _
      $region76: #{tpu_custom_call.1} parent=5 // pred_fallthru
        _
    $region6: #{tpu_custom_call.1} parent=1 // loop_footer
      %s30 = sadd.s32 1, %s26
    $region7: #{tpu_custom_call.1} parent=1 // loop_footer_branch
      %25 = sbr.rel target = $region3
    $region8: #{tpu_custom_call.1} parent=1 // loop_exit
      _
    %922 = vsyncpa [#allocation3], 1
    %s923 = scalar_lea.sflag [#allocation3], 1
    %924 = vsyncpa %s923, 1
    %925 = vsyncpa [#allocation6], 1
    %926 = vsyncpa [#allocation9], 1
    %927 = vsyncpa [#allocation4], 1
    %s928 = scalar_lea.sflag [#allocation4], 1
    %929 = vsyncpa %s928, 1
    %930 = vsyncpa [#allocation12], 1
    %s931 = scalar_lea.sflag [#allocation12], 1
    %932 = vsyncpa %s931, 1

</llo_original>
